<compile_context>
chip_gen: v5e
topology: v5e:2x2
jax: 0.10.0
libtpu: 0.0.40
codegen_flags: <defaults>
</compile_context>

<pallas_src>
import jax
import jax.numpy as jnp
from jax.experimental import pallas as pl
from jax.experimental.pallas import tpu as pltpu

_LANE = 128
_SUBLANE = 8
_VMEM_BLOCK_BUDGET = 24 * 1024 * 1024  # target for the double-buffered block footprint


# -----------------------------------------------------------------------------
# Init-time weight preparation (outside the hot path).
# -----------------------------------------------------------------------------
def prepare_weights(weight, dim_in, dtype=None):
    """Pre-transpose the PyTorch-style weight (dim_out, sum(d_i)) once at init.

    Returns (wt_full, wt_parts):
      wt_full : (sum(d_i), dim_out)  contiguous W^T      -> fused-concat kernel path
      wt_parts: tuple of (d_i, dim_out) column-slices     -> per-input matmul path
    Optionally cast to `dtype` (e.g. jnp.bfloat16 on v6e/v7x) to halve weight HBM traffic.
    """
    dim_in = tuple(int(d) for d in dim_in)
    weight = jnp.asarray(weight)
    assert weight.shape[1] == sum(dim_in), "sum(dim_in) must match the weight's input dim"
    wt_full = weight.T  # materialized once, at init
    if dtype is not None:
        wt_full = wt_full.astype(dtype)
    parts, off = [], 0
    for d in dim_in:
        parts.append(wt_full[off:off + d, :])
        off += d
    return wt_full, tuple(parts)


# -----------------------------------------------------------------------------
# Kernel bodies.
# -----------------------------------------------------------------------------
def _make_fused_kernel(dims_in):
    """In-VMEM concat of the x_i blocks + a single MXU matmul over K = sum(d_i)."""
    n = len(dims_in)
    offs, off = [], 0
    for d in dims_in:
        offs.append(off)
        off += d

    def kernel(*refs):
        x_refs = refs[:n]
        wt_ref = refs[n]
        o_ref = refs[n + 1]
        xcat_ref = refs[n + 2]
        for x_ref, o0, d in zip(x_refs, offs, dims_in):
            xcat_ref[:, o0:o0 + d] = x_ref[...].astype(xcat_ref.dtype)
        o_ref[...] = jnp.dot(
            xcat_ref[...],
            wt_ref[...].astype(xcat_ref.dtype),
            preferred_element_type=jnp.float32,
        ).astype(o_ref.dtype)

    return kernel


def _make_split_kernel(n, compute_dtype):
    """Per-input matmuls accumulated in place into an f32 VMEM scratch."""

    def kernel(*refs):
        x_refs = refs[:n]
        wt_refs = refs[n:2 * n]
        o_ref = refs[2 * n]
        acc_ref = refs[2 * n + 1]
        for idx in range(n):
            part = jnp.dot(
                x_refs[idx][...].astype(compute_dtype),
                wt_refs[idx][...].astype(compute_dtype),
                preferred_element_type=jnp.float32,
            )
            if idx == 0:
                acc_ref[...] = part
            else:
                acc_ref[...] += part
        o_ref[...] = acc_ref[...].astype(o_ref.dtype)

    return kernel


# -----------------------------------------------------------------------------
# Host wrapper.
# -----------------------------------------------------------------------------
def concat_fuse(args, weights, *, tm=256, tn=512, min_fused_k=256):
    """Fused ConcatFuse forward: concat(args, axis=1) @ W.T.

    args:    list of (M, d_i) activations.
    weights: output of prepare_weights(weight, dim_in).
    """
    wt_full, wt_parts = weights
    args = [jnp.asarray(a) for a in args]
    n = len(args)
    assert n >= 1 and len(wt_parts) == n
    M = int(args[0].shape[0])
    dims_in = tuple(int(a.shape[1]) for a in args)
    sum_d = sum(dims_in)
    Nout = int(wt_full.shape[1])
    assert wt_full.shape == (sum_d, Nout)
    for a, w, d in zip(args, wt_parts, dims_in):
        assert a.shape == (M, d)
        assert w.shape == (d, Nout)
    assert tm % _SUBLANE == 0 and tn % _LANE == 0, \
        "tm must be a multiple of 8 and tn a multiple of 128"

    out_dtype = args[0].dtype
    # Matmul compute dtype: promote. bf16 weights keep their HBM/DMA byte savings and are cast
    # up per-tile in VMEM; accumulation is always f32 via preferred_element_type.
    compute_dtype = jnp.promote_types(args[0].dtype, wt_full.dtype)

    # Clamp tiles to the problem (a block dim equal to the full array dim is always legal).
    tm = M if M <= tm else tm
    tn = Nout if Nout <= tn else tn

    # v7x megacore: if the problem collapsed to a single block, split an output axis in two so
    # both TensorCores get work (no-op for tiny demo shapes).
    if pl.cdiv(M, tm) * pl.cdiv(Nout, tn) == 1:
        if Nout >= 2 * _LANE:
            tn = ((Nout + 1) // 2 + _LANE - 1) // _LANE * _LANE
        elif M >= 2 * _SUBLANE:
            tm = ((M + 1) // 2 + _SUBLANE - 1) // _SUBLANE * _SUBLANE

    # Fused-K (in-VMEM concat) unless every d_i already fills the MXU on its own.
    fused = n > 1 and any(d < min_fused_k for d in dims_in)

    x_isz = jnp.dtype(args[0].dtype).itemsize
    w_isz = jnp.dtype(wt_full.dtype).itemsize
    o_isz = jnp.dtype(out_dtype).itemsize
    c_isz = jnp.dtype(compute_dtype).itemsize

    def block_bytes(tm_, tn_):
        xb = 2 * sum(tm_ * d * x_isz for d in dims_in)            # double-buffered x blocks
        wb = 2 * sum_d * tn_ * w_isz                              # double-buffered W^T block(s)
        ob = 2 * tm_ * tn_ * o_isz                                # double-buffered out block
        sb = tm_ * sum_d * c_isz if fused else tm_ * tn_ * 4      # concat / f32 acc scratch
        return xb + wb + ob + sb

    # Shrink tiles until the footprint fits a budget that is safe on every generation.
    # TODO(synk): for very large sum(d_i), add a K grid axis ("arbitrary", innermost) with a
    # pl.when(k==0)/pl.when(k==last) f32 accumulator instead of only shrinking tm/tn.
    while block_bytes(tm, tn) > _VMEM_BLOCK_BUDGET and tn > _LANE and tn % _LANE == 0:
        tn = max(_LANE, (tn // 2 + _LANE - 1) // _LANE * _LANE)
    while block_bytes(tm, tn) > _VMEM_BLOCK_BUDGET and tm > _SUBLANE and tm % _SUBLANE == 0:
        tm = max(_SUBLANE, (tm // 2 + _SUBLANE - 1) // _SUBLANE * _SUBLANE)

    m_tiles = pl.cdiv(M, tm)
    n_tiles = pl.cdiv(Nout, tn)

    # Choose the resident operand by total HBM traffic: inner axis streams, outer stays put.
    x_total = M * sum_d * x_isz
    w_total = sum_d * Nout * w_isz
    m_outer = (x_total + m_tiles * w_total) <= (w_total + n_tiles * x_total)

    if m_outer:
        grid = (m_tiles, n_tiles)
        x_map = lambda i, j: (i, 0)
        w_map = lambda i, j: (0, j)
        o_map = lambda i, j: (i, j)
    else:
        grid = (n_tiles, m_tiles)
        x_map = lambda j, i: (i, 0)
        w_map = lambda j, i: (0, j)
        o_map = lambda j, i: (i, j)

    x_specs = [pl.BlockSpec((tm, d), x_map) for d in dims_in]
    out_spec = pl.BlockSpec((tm, tn), o_map)

    if fused:
        kernel = _make_fused_kernel(dims_in)
        w_specs = [pl.BlockSpec((sum_d, tn), w_map)]
        w_args = (wt_full,)
        scratch = [pltpu.VMEM((tm, sum_d), compute_dtype)]
    else:
        kernel = _make_split_kernel(n, compute_dtype)
        w_specs = [pl.BlockSpec((d, tn), w_map) for d in dims_in]
        w_args = tuple(wt_parts)
        scratch = [pltpu.VMEM((tm, tn), jnp.float32)]

    vmem_limit = int(min(max(block_bytes(tm, tn) + (8 << 20), 16 << 20), 48 << 20))

    return pl.pallas_call(
        kernel,
        out_shape=jax.ShapeDtypeStruct((M, Nout), out_dtype),
        grid_spec=pltpu.PrefetchScalarGridSpec(
            num_scalar_prefetch=0,
            grid=grid,
            in_specs=x_specs + w_specs,
            out_specs=out_spec,
            scratch_shapes=scratch,
        ),
        compiler_params=pltpu.CompilerParams(
            dimension_semantics=("parallel", "parallel"),
            vmem_limit_bytes=vmem_limit,
        ),
    )(*args, *w_args)


if __name__ == "__main__":
    key = jax.random.PRNGKey(0)
    # ConcatFuse(False, d1, d2, d3, dim_out): Linear(d1+d2+d3 -> dim_out, bias=False)
    batch = 8
    dim_in = (32, 32, 64)   # sum = 128
    dim_out = 128

    k_w, k1, k2, k3 = jax.random.split(key, 4)
    # PyTorch Linear weight shape: (dim_out, sum(dim_in)).
    bound = 1.0 / (float(sum(dim_in)) ** 0.5)
    weight = jax.random.uniform(
        k_w, (dim_out, sum(dim_in)), jnp.float32, minval=-bound, maxval=bound
    )
    x1 = jax.random.normal(k1, (batch, dim_in[0]), jnp.float32)
    x2 = jax.random.normal(k2, (batch, dim_in[1]), jnp.float32)
    x3 = jax.random.normal(k3, (batch, dim_in[2]), jnp.float32)

    # One-time weight prep (pre-transposed, outside the per-step hot path).
    weights = prepare_weights(weight, dim_in)

    out = concat_fuse([x1, x2, x3], weights)
    out = jax.block_until_ready(out)

    # Plain-JAX reference (full-precision matmul for a fair f32 comparison).
    ref = jnp.dot(
        jnp.concatenate([x1, x2, x3], axis=1), weight.T,
        precision=jax.lax.Precision.HIGHEST,
    )
    assert out.shape == (batch, dim_out)
    assert jnp.allclose(out, ref, atol=1e-4, rtol=1e-4), float(jnp.max(jnp.abs(out - ref)))

    print("KERNEL_OK")
</pallas_src>

<mosaic_0001>
module attributes {stable_mosaic.version = 11 : i64} {
  func.func @kernel(%arg0: i32, %arg1: i32, %arg2: memref<8x32xf32, #tpu.memory_space<vmem>>, %arg3: memref<8x32xf32, #tpu.memory_space<vmem>>, %arg4: memref<8x64xf32, #tpu.memory_space<vmem>>, %arg5: memref<128x128xf32, #tpu.memory_space<vmem>>, %arg6: memref<8x128xf32, #tpu.memory_space<vmem>>, %arg7: memref<8x128xf32, #tpu.memory_space<vmem>>) attributes {dimension_semantics = [#tpu.dimension_semantics<parallel>, #tpu.dimension_semantics<parallel>], iteration_bounds = array<i64: 1, 1>, scalar_prefetch = 0 : i64, scratch_operands = 1 : i64, tpu.core_type = #tpu.core_type<tc>, window_params = [{transform_indices = @transform_0, window_bounds = array<i64: 8, 32>}, {transform_indices = @transform_1, window_bounds = array<i64: 8, 32>}, {transform_indices = @transform_2, window_bounds = array<i64: 8, 64>}, {transform_indices = @transform_3, window_bounds = array<i64: 128, 128>}, {transform_indices = @transform_4, window_bounds = array<i64: 8, 128>}]} {
    %c0 = arith.constant 0 : index
    %c0_0 = arith.constant 0 : index
    %0 = vector.load %arg2[%c0, %c0_0] : memref<8x32xf32, #tpu.memory_space<vmem>>, vector<8x32xf32>
    %c0_1 = arith.constant 0 : index
    %c0_2 = arith.constant 0 : index
    %1 = vector.load %arg7[%c0_1, %c0_2] : memref<8x128xf32, #tpu.memory_space<vmem>>, vector<8x32xf32>
    tpu.vector_store %arg7[%c0_1, %c0_2], %0 {strides = array<i32>} : memref<8x128xf32, #tpu.memory_space<vmem>>, vector<8x32xf32>,
    %c0_3 = arith.constant 0 : index
    %c0_4 = arith.constant 0 : index
    %2 = vector.load %arg3[%c0_3, %c0_4] : memref<8x32xf32, #tpu.memory_space<vmem>>, vector<8x32xf32>
    %c0_5 = arith.constant 0 : index
    %c32 = arith.constant 32 : index
    %3 = vector.load %arg7[%c0_5, %c32] : memref<8x128xf32, #tpu.memory_space<vmem>>, vector<8x32xf32>
    tpu.vector_store %arg7[%c0_5, %c32], %2 {strides = array<i32>} : memref<8x128xf32, #tpu.memory_space<vmem>>, vector<8x32xf32>,
    %c0_6 = arith.constant 0 : index
    %c0_7 = arith.constant 0 : index
    %4 = vector.load %arg4[%c0_6, %c0_7] : memref<8x64xf32, #tpu.memory_space<vmem>>, vector<8x64xf32>
    %c0_8 = arith.constant 0 : index
    %c64 = arith.constant 64 : index
    %5 = vector.load %arg7[%c0_8, %c64] : memref<8x128xf32, #tpu.memory_space<vmem>>, vector<8x64xf32>
    tpu.vector_store %arg7[%c0_8, %c64], %4 {strides = array<i32>} : memref<8x128xf32, #tpu.memory_space<vmem>>, vector<8x64xf32>,
    %c0_9 = arith.constant 0 : index
    %c0_10 = arith.constant 0 : index
    %6 = vector.load %arg7[%c0_9, %c0_10] : memref<8x128xf32, #tpu.memory_space<vmem>>, vector<8x128xf32>
    %c0_11 = arith.constant 0 : index
    %c0_12 = arith.constant 0 : index
    %7 = vector.load %arg5[%c0_11, %c0_12] : memref<128x128xf32, #tpu.memory_space<vmem>>, vector<128x128xf32>
    %cst = arith.constant dense<0.000000e+00> : vector<8x128xf32>
    %8 = tpu.matmul %6, %7, %cst {dimension_numbers = #tpu.dot_dimension_numbers<[1], [0], [0], [1], [0, 0, 1, 1], [], []>} : vector<8x128xf32>, vector<128x128xf32>, vector<8x128xf32> -> vector<8x128xf32>
    %c0_13 = arith.constant 0 : index
    %c0_14 = arith.constant 0 : index
    %9 = vector.load %arg6[%c0_13, %c0_14] : memref<8x128xf32, #tpu.memory_space<vmem>>, vector<8x128xf32>
    tpu.vector_store %arg6[%c0_13, %c0_14], %8 {strides = array<i32>} : memref<8x128xf32, #tpu.memory_space<vmem>>, vector<8x128xf32>,
    return
  }
  func.func @transform_0(%arg0: i32, %arg1: i32) -> (i32, i32) {
    %c0_i32 = arith.constant 0 : i32
    %c0_i32_0 = arith.constant 0 : i32
    return %arg0, %c0_i32 : i32, i32
  }
  func.func @transform_1(%arg0: i32, %arg1: i32) -> (i32, i32) {
    %c0_i32 = arith.constant 0 : i32
    %c0_i32_0 = arith.constant 0 : i32
    return %arg0, %c0_i32 : i32, i32
  }
  func.func @transform_2(%arg0: i32, %arg1: i32) -> (i32, i32) {
    %c0_i32 = arith.constant 0 : i32
    %c0_i32_0 = arith.constant 0 : i32
    return %arg0, %c0_i32 : i32, i32
  }
  func.func @transform_3(%arg0: i32, %arg1: i32) -> (i32, i32) {
    %c0_i32 = arith.constant 0 : i32
    %c0_i32_0 = arith.constant 0 : i32
    return %c0_i32, %arg1 : i32, i32
  }
  func.func @transform_4(%arg0: i32, %arg1: i32) -> (i32, i32) {
    %c0_i32 = arith.constant 0 : i32
    return %arg0, %arg1 : i32, i32
  }
}

</mosaic_0001>

<llo_original>
// kernel: tpu_custom_call.1
$region0: #{tpu_custom_call.1}
  #allocation0 [shape = 'u32[]', space=smem, size = 0x4, offset = 0x4, fixed_abs, tag = 'smem constant byte address 0x4 - core index']
  #allocation1 [shape = 'u32[72,128]{1,0:T(1,128)}', space=vmem, size = 0x9000, scoped, tag = 'internal scratch']
  #allocation2 [shape = 'f32[8,128]{1,0:T(8,128)}', space=vmem, size = 0x1000, scoped, tag = 'scratch operand']
  %s0 = inlined_call_operand.hbm [shape: f32[8,32], index: 0, kind: input, shape index: {}]
  %s1 = inlined_call_operand.hbm [shape: f32[8,32], index: 1, kind: input, shape index: {}]
  %s2 = inlined_call_operand.hbm [shape: f32[8,64], index: 2, kind: input, shape index: {}]
  %s3 = inlined_call_operand.hbm [shape: f32[128,128], index: 3, kind: input, shape index: {}]
  %s4 = inlined_call_operand.hbm [shape: f32[8,128], index: 4, kind: output, shape index: {}]
  %s5 = sld [smem:[#allocation0]]
  $region42: #{tpu_custom_call.1} parent=0
    _
  %s7 = ssub.s32 1, %s5
  %s8 = scalar_select 0, %s7, %s5
  $region1: #{tpu_custom_call.1} parent=0
    #allocation3 [shape = 'u8[4096]{0}', space=vmem, size = 0x1000, scoped, tag = 'input window, operand 0, single buffered']
    #allocation4 [shape = 's32[1]{0}', space=sflag, size = 0x4, scoped, tag = 'scoped memory for tpu_custom_call.1']
    #allocation5 [shape = 's32[1]{0}', space=sflag, size = 0x4, scoped, tag = 'scoped memory for tpu_custom_call.1']
    #allocation6 [shape = 'u8[4096]{0}', space=vmem, size = 0x1000, scoped, tag = 'input window, operand 1, single buffered']
    #allocation7 [shape = 's32[1]{0}', space=sflag, size = 0x4, scoped, tag = 'scoped memory for tpu_custom_call.1']
    #allocation8 [shape = 'u8[4096]{0}', space=vmem, size = 0x1000, scoped, tag = 'input window, operand 2, single buffered']
    #allocation9 [shape = 'u8[65536]{0}', space=vmem, size = 0x10000, scoped, tag = 'input window, operand 3, single buffered']
    #allocation10 [shape = 's32[1]{0}', space=sflag, size = 0x4, scoped, tag = 'scoped memory for tpu_custom_call.1']
    #allocation11 [shape = 'u8[4096]{0}', space=vmem, size = 0x1000, scoped, tag = 'output window, operand 0, single buffered']
    %9 = vsyncpa [#allocation4], 0
    %10 = vsyncpa [#allocation7], 0
    %11 = vsyncpa [#allocation10], 0
    %12 = vsyncpa [#allocation5], 0
    // Predicated region
    $region2: #{tpu_custom_call.1} parent=1 // pred_check
      _
    $region3: #{tpu_custom_call.1} parent=1 // pred_check_branch
      %14 = sbr.rel (0) target = $region5
    $region4: #{tpu_custom_call.1} parent=1 // pred_region
      %16 = vsyncadd [#allocation4], 0
      %s18 = sshll.u32 %s0, 4
      %s19 = int_to_ptr.hbm [resolvable:$true] %s18
      %s20 = sshll.u32 [#allocation3], 4
      %s21 = int_to_ptr.vmem [resolvable:$true] %s20
      %23 = dma.hbm_to_vmem [thread:$0]  %s19, 128, %s21, [#allocation4]
    $region5: #{tpu_custom_call.1} parent=1 // pred_fallthru
      _
    // Predicated region
    $region6: #{tpu_custom_call.1} parent=1 // pred_check
      _
    $region7: #{tpu_custom_call.1} parent=1 // pred_check_branch
      %25 = sbr.rel (0) target = $region9
    $region8: #{tpu_custom_call.1} parent=1 // pred_region
      %27 = vsyncadd [#allocation7], 0
      %s29 = sshll.u32 %s1, 4
      %s30 = int_to_ptr.hbm [resolvable:$true] %s29
      %s31 = sshll.u32 [#allocation6], 4
      %s32 = int_to_ptr.vmem [resolvable:$true] %s31
      %34 = dma.hbm_to_vmem [thread:$0]  %s30, 128, %s32, [#allocation7]
    $region9: #{tpu_custom_call.1} parent=1 // pred_fallthru
      _
    // Predicated region
    $region10: #{tpu_custom_call.1} parent=1 // pred_check
      _
    $region11: #{tpu_custom_call.1} parent=1 // pred_check_branch
      %36 = sbr.rel (0) target = $region13
    $region12: #{tpu_custom_call.1} parent=1 // pred_region
      %38 = vsyncadd [#allocation7], 0
      %s40 = sshll.u32 %s2, 4
      %s41 = int_to_ptr.hbm [resolvable:$true] %s40
      %s42 = sshll.u32 [#allocation8], 4
      %s43 = int_to_ptr.vmem [resolvable:$true] %s42
      %45 = dma.hbm_to_vmem [thread:$0]  %s41, 128, %s43, [#allocation7]
    $region13: #{tpu_custom_call.1} parent=1 // pred_fallthru
      _
    // Predicated region
    $region14: #{tpu_custom_call.1} parent=1 // pred_check
      _
    $region15: #{tpu_custom_call.1} parent=1 // pred_check_branch
      %47 = sbr.rel (0) target = $region17
    $region16: #{tpu_custom_call.1} parent=1 // pred_region
      %49 = vsyncadd [#allocation10], 0
      %s50 = sshll.u32 %s3, 4
      %s51 = int_to_ptr.hbm [resolvable:$true] %s50
      %s52 = sshll.u32 [#allocation9], 4
      %s53 = int_to_ptr.vmem [resolvable:$true] %s52
      %58 = dma.hbm_to_vmem [thread:$0]  %s51, 2048, %s53, [#allocation10], 128, 128, 8
    $region17: #{tpu_custom_call.1} parent=1 // pred_fallthru
      _
    // Predicated region
    $region18: #{tpu_custom_call.1} parent=1 // pred_check
      _
    $region19: #{tpu_custom_call.1} parent=1 // pred_check_branch
      %60 = sbr.rel (0) target = $region21
    $region20: #{tpu_custom_call.1} parent=1 // pred_region
      %62 = dma.done [#allocation4], 128
    $region21: #{tpu_custom_call.1} parent=1 // pred_fallthru
      _
    // Predicated region
    $region22: #{tpu_custom_call.1} parent=1 // pred_check
      _
    $region23: #{tpu_custom_call.1} parent=1 // pred_check_branch
      %64 = sbr.rel (0) target = $region25
    $region24: #{tpu_custom_call.1} parent=1 // pred_region
      %66 = dma.done [#allocation7], 128
    $region25: #{tpu_custom_call.1} parent=1 // pred_fallthru
      _
    // Predicated region
    $region26: #{tpu_custom_call.1} parent=1 // pred_check
      _
    $region27: #{tpu_custom_call.1} parent=1 // pred_check_branch
      %68 = sbr.rel (0) target = $region29
    $region28: #{tpu_custom_call.1} parent=1 // pred_region
      %70 = dma.done [#allocation7], 128
    $region29: #{tpu_custom_call.1} parent=1 // pred_fallthru
      _
    // Predicated region
    $region30: #{tpu_custom_call.1} parent=1 // pred_check
      _
    $region31: #{tpu_custom_call.1} parent=1 // pred_check_branch
      %72 = sbr.rel (0) target = $region33
    $region32: #{tpu_custom_call.1} parent=1 // pred_region
      %74 = dma.done [#allocation10], 2048
    $region33: #{tpu_custom_call.1} parent=1 // pred_fallthru
      _
    %v75 = vld [vmem:[#allocation3] sm:$0xff]
    %vm76 = vcmask 261120
    %77 = vst.msk [vmem:[#allocation2] sm:$0xff] %vm76, %v75
    %v78 = vld [vmem:[#allocation6] sm:$0xff]
    %80 = vrot.lane.b32.xlu0 %v78, 32
    %v81 = vpop.permute.xlu0 %80
    %vm83 = vcmask 523520
    %84 = vst.msk [vmem:[#allocation2] sm:$0xff] %vm83, %v81
    %v85 = vld [vmem:[#allocation8] sm:$0xff]
    %87 = vrot.lane.b32.xlu0 %v85, 64
    %v88 = vpop.permute.xlu0 %87
    %vm90 = vcmask 1048064
    %91 = vst.msk [vmem:[#allocation2] sm:$0xff] %vm90, %v88
    %v92 = vld [vmem:[#allocation2] sm:$0xff]
    %v93 = vld [vmem:[#allocation9] sm:$0xff]
    %v94 = vld [vmem:[#allocation9 + $0x8] sm:$0xff]
    %v95 = vld [vmem:[#allocation9 + $0x10] sm:$0xff]
    %v96 = vld [vmem:[#allocation9 + $0x18] sm:$0xff]
    %v97 = vld [vmem:[#allocation9 + $0x20] sm:$0xff]
    %v98 = vld [vmem:[#allocation9 + $0x28] sm:$0xff]
    %v99 = vld [vmem:[#allocation9 + $0x30] sm:$0xff]
    %v100 = vld [vmem:[#allocation9 + $0x38] sm:$0xff]
    %v101 = vld [vmem:[#allocation9 + $0x40] sm:$0xff]
    %v102 = vld [vmem:[#allocation9 + $0x48] sm:$0xff]
    %v103 = vld [vmem:[#allocation9 + $0x50] sm:$0xff]
    %v104 = vld [vmem:[#allocation9 + $0x58] sm:$0xff]
    %v105 = vld [vmem:[#allocation9 + $0x60] sm:$0xff]
    %v106 = vld [vmem:[#allocation9 + $0x68] sm:$0xff]
    %v107 = vld [vmem:[#allocation9 + $0x70] sm:$0xff]
    %v108 = vld [vmem:[#allocation9 + $0x78] sm:$0xff]
    %109 = vmatpush.msra.mxu0 %v108
    %110 = vmatpush.msra.mxu0 %v107
    %111 = vmatpush.msra.mxu0 %v106
    %112 = vmatpush.msra.mxu0 %v105
    %113 = vmatpush.msra.mxu0 %v104
    %114 = vmatpush.msra.mxu0 %v103
    %115 = vmatpush.msra.mxu0 %v102
    %116 = vmatpush.msra.mxu0 %v101
    %117 = vmatpush.msra.mxu0 %v100
    %118 = vmatpush.msra.mxu0 %v99
    %119 = vmatpush.msra.mxu0 %v98
    %120 = vmatpush.msra.mxu0 %v97
    %121 = vmatpush.msra.mxu0 %v96
    %122 = vmatpush.msra.mxu0 %v95
    %123 = vmatpush.msra.mxu0 %v94
    %124 = vmatpush.msra.mxu0 %v93
    %125 = vmatmul.f32.gmra.mxu0 %v92
    %v126 = vpop.f32.mrf.mxu0
    %v127 = vadd.f32 0.0, %v126
    %128 = vdwg.mxu0
    %129 = vst [vmem:[#allocation11] sm:$0xff] %v127
    // Predicated region
    $region34: #{tpu_custom_call.1} parent=1 // pred_check
      _
    $region35: #{tpu_custom_call.1} parent=1 // pred_check_branch
      %131 = sbr.rel (0) target = $region37
    $region36: #{tpu_custom_call.1} parent=1 // pred_region
      %133 = vsyncadd [#allocation5], 0
      %s135 = sshll.u32 [#allocation11], 4
      %s136 = int_to_ptr.vmem [resolvable:$true] %s135
      %s137 = sshll.u32 %s4, 4
      %s138 = int_to_ptr.hbm [resolvable:$true] %s137
      %140 = dma.vmem_to_hbm [thread:$0]  %s136, 128, %s138, [#allocation5]
    $region37: #{tpu_custom_call.1} parent=1 // pred_fallthru
      _
    // Predicated region
    $region38: #{tpu_custom_call.1} parent=1 // pred_check
      _
    $region39: #{tpu_custom_call.1} parent=1 // pred_check_branch
      %142 = sbr.rel (0) target = $region41
    $region40: #{tpu_custom_call.1} parent=1 // pred_region
      %144 = dma.done [#allocation5], 128
    $region41: #{tpu_custom_call.1} parent=1 // pred_fallthru
      _
    %145 = vsyncpa [#allocation4], 1
    %146 = vsyncpa [#allocation7], 1
    %147 = vsyncpa [#allocation10], 1
    %148 = vsyncpa [#allocation5], 1

</llo_original>
